<compile_context>
chip_gen: v6e
topology: v6e:2x2x1
jax: 0.10.0
libtpu: 0.0.40
codegen_flags: <defaults>
</compile_context>

<pallas_src>
import numpy as np
import jax
import jax.numpy as jnp
from jax.experimental import pallas as pl
from jax.experimental.pallas import tpu as pltpu


def _round_up(a, b):
    return ((a + b - 1) // b) * b


def _fused_head_kernel(hid_ref, x_ref, w_ref, b_ref, o_ref):
    # hid_ref: SMEM (n_tiles,) int32 -- consumed only by the index_maps.
    # x_ref: (Cmax, tm)  w_ref: (Cout_pad, Cmax)  b_ref: (Cout_pad, 1)
    # o_ref: (Cout_pad, tm)
    del hid_ref
    acc = jnp.dot(w_ref[...], x_ref[...], preferred_element_type=jnp.float32)
    # bias add in f32 (v5e VPU has no bf16), cast on store
    o_ref[...] = (acc + b_ref[...].astype(jnp.float32)).astype(o_ref.dtype)


def fused_head_conv1x1(params, xs, *, tm_max=4096):
    """N-way fused 1x1 convs with bias (one pallas_call).

    params: sequence of (weight (Cout, Cin_h), bias (Cout,))
    xs:     sequence of activations (N, Cin_h, H_h, W_h), same N and dtype.
    returns: tuple of (N, Cout, H_h, W_h)
    """
    nheads = len(xs)
    cout = params[0][0].shape[0]
    cout_pad = _round_up(cout, 8)                 # clean sublane extent (255 -> 256)
    cmax = max(w.shape[1] for w, _ in params)     # 192 for this module
    dtype = xs[0].dtype

    # Pixels per head with the batch folded into the pixel (lane) axis.
    p_list = [int(x.shape[0]) * int(x.shape[2]) * int(x.shape[3]) for x in xs]

    # Lane-dense pixel tile: multiple of 128, large enough to amortize the
    # ~0.35us/grid-step overhead, capped so double-buffered x+out stay well
    # under default scoped VMEM on v5e (16 MiB) and v7x (32 MiB of 64 MiB).
    tm = min(tm_max, _round_up(max(p_list), 128))

    # Round each head's segment to a multiple of tm: no tile straddles heads.
    segs = [_round_up(p, tm) for p in p_list]
    offsets = np.concatenate([[0], np.cumsum(segs)]).astype(np.int64)
    total_p = int(offsets[-1])
    n_tiles = total_p // tm                       # >= nheads >= 3 -> feeds both v7x TCs

    # ---- wrapper-side packing (free-ish at head scales; all static shapes) ----
    cols = []
    for x, p, seg in zip(xs, p_list, segs):
        n, c, h, w = x.shape
        # (N, C, H, W) -> (C, N*H*W): batch folded into the lane axis
        x2d = x.reshape(n, c, h * w).transpose(1, 0, 2).reshape(c, p)
        # zero-pad channels to Cmax and pixels to the segment boundary
        cols.append(jnp.pad(x2d, ((0, cmax - c), (0, seg - p))))
    x_all = jnp.concatenate(cols, axis=1)                       # (Cmax, total_p)

    w_all = jnp.stack([
        jnp.pad(w, ((0, cout_pad - cout), (0, cmax - w.shape[1])))
        for w, _ in params]).astype(dtype)                      # (H, Cout_pad, Cmax)
    b_all = jnp.stack([
        jnp.pad(b, (0, cout_pad - cout)).reshape(cout_pad, 1)
        for _, b in params]).astype(jnp.float32)                # (H, Cout_pad, 1)

    # Which head each pixel tile belongs to (scalar-prefetched -> SMEM).
    head_ids = jnp.asarray(
        np.repeat(np.arange(nheads, dtype=np.int32), [s // tm for s in segs]))

    out_all = pl.pallas_call(
        _fused_head_kernel,
        out_shape=jax.ShapeDtypeStruct((cout_pad, total_p), dtype),
        grid_spec=pltpu.PrefetchScalarGridSpec(
            num_scalar_prefetch=1,
            grid=(n_tiles,),
            in_specs=[
                # lane-dense activation tile (lanes = pixels, multiple of 128)
                pl.BlockSpec((cmax, tm), lambda i, hid: (0, i)),
                # per-head weight / bias selected via scalar prefetch; index is
                # constant across consecutive tiles of the same head.
                pl.BlockSpec((None, cout_pad, cmax), lambda i, hid: (hid[i], 0, 0)),
                pl.BlockSpec((None, cout_pad, 1), lambda i, hid: (hid[i], 0, 0)),
            ],
            out_specs=pl.BlockSpec((cout_pad, tm), lambda i, hid: (0, i)),
        ),
        compiler_params=pltpu.CompilerParams(
            dimension_semantics=("parallel",)),   # megacore-shardable on v7x
    )(head_ids, x_all, w_all, b_all)

    # ---- unpack: drop channel/pixel padding, restore NCHW per head ----
    ys = []
    for x, p, off in zip(xs, p_list, offsets[:-1]):
        n, _, h, w = x.shape
        y2d = out_all[:cout, int(off):int(off) + p]             # (Cout, N*H*W)
        ys.append(y2d.reshape(cout, n, h, w).transpose(1, 0, 2, 3))
    return tuple(ys)


@jax.jit
def _head_forward(params, x1, x2, x3):
    # Single fused pallas_call for all three branches.
    return fused_head_conv1x1(params, (x1, x2, x3))


class HeadPallas:
    """Pallas equivalent of models/yolov4.py::Head (three 1x1 convs with bias)."""

    def __init__(self, out_channels, key):
        k = jax.random.split(key, 6)

        def init_conv(kw, kb, cin, cout):
            # deterministic synthetic init (kaiming-uniform-ish bound like nn.Conv2d)
            bound = 1.0 / (cin ** 0.5)
            wgt = jax.random.uniform(kw, (cout, cin), jnp.float32, -bound, bound)
            b = jax.random.uniform(kb, (cout,), jnp.float32, -bound, bound)
            return wgt, b

        self.w1, self.b1 = init_conv(k[0], k[1], 96, out_channels)
        self.w2, self.b2 = init_conv(k[2], k[3], 96, out_channels)
        self.w3, self.b3 = init_conv(k[4], k[5], 192, out_channels)

    def params(self):
        return ((self.w1, self.b1), (self.w2, self.b2), (self.w3, self.b3))

    def __call__(self, x1, x2, x3):
        return _head_forward(self.params(), x1, x2, x3)


if __name__ == "__main__":
    key = jax.random.PRNGKey(0)
    k_in1, k_in2, k_in3, k_params = jax.random.split(key, 4)

    out_channels = 32
    # small shapes consistent with the module's channel contract (96, 96, 192)
    x1 = jax.random.normal(k_in1, (2, 96, 16, 16), jnp.float32)
    x2 = jax.random.normal(k_in2, (2, 96, 8, 8), jnp.float32)
    x3 = jax.random.normal(k_in3, (2, 192, 4, 4), jnp.float32)

    head = HeadPallas(out_channels, k_params)
    y1, y2, y3 = head(x1, x2, x3)
    jax.block_until_ready((y1, y2, y3))

    # sanity check against a plain-JAX reference (einsum over channels)
    def ref(x, w, b):
        return jnp.einsum("nchw,oc->nohw", x, w) + b[None, :, None, None]

    assert y1.shape == (2, out_channels, 16, 16)
    assert y2.shape == (2, out_channels, 8, 8)
    assert y3.shape == (2, out_channels, 4, 4)
    assert jnp.allclose(y1, ref(x1, head.w1, head.b1), atol=1e-4, rtol=1e-4)
    assert jnp.allclose(y2, ref(x2, head.w2, head.b2), atol=1e-4, rtol=1e-4)
    assert jnp.allclose(y3, ref(x3, head.w3, head.b3), atol=1e-4, rtol=1e-4)

    print("KERNEL_OK")
</pallas_src>

<mosaic_0001>
module attributes {stable_mosaic.version = 11 : i64} {
  func.func @_fused_head_kernel(%arg0: i32, %arg1: memref<3xi32, #tpu.memory_space<smem>>, %arg2: memref<192x512xf32, #tpu.memory_space<vmem>>, %arg3: memref<1x32x192xf32, #tpu.memory_space<vmem>>, %arg4: memref<1x32x1xf32, #tpu.memory_space<vmem>>, %arg5: memref<32x512xf32, #tpu.memory_space<vmem>>) attributes {dimension_semantics = [#tpu.dimension_semantics<parallel>], iteration_bounds = array<i64: 3>, scalar_prefetch = 1 : i64, scratch_operands = 0 : i64, tpu.core_type = #tpu.core_type<tc>, window_params = [{transform_indices = @transform_0, window_bounds = array<i64: 192, 512>}, {transform_indices = @transform_1, window_bounds = array<i64: 1, 32, 192>}, {transform_indices = @transform_2, window_bounds = array<i64: 1, 32, 1>}, {transform_indices = @transform_3, window_bounds = array<i64: 32, 512>}]} {
    %c0 = arith.constant 0 : index
    %c0_0 = arith.constant 0 : index
    %c0_1 = arith.constant 0 : index
    %0 = vector.load %arg3[%c0, %c0_0, %c0_1] : memref<1x32x192xf32, #tpu.memory_space<vmem>>, vector<1x32x192xf32>
    %1 = vector.shape_cast %0 : vector<1x32x192xf32> to vector<32x192xf32>
    %c0_2 = arith.constant 0 : index
    %c0_3 = arith.constant 0 : index
    %2 = vector.load %arg2[%c0_2, %c0_3] : memref<192x512xf32, #tpu.memory_space<vmem>>, vector<192x512xf32>
    %cst = arith.constant dense<0.000000e+00> : vector<32x512xf32>
    %3 = tpu.matmul %1, %2, %cst {dimension_numbers = #tpu.dot_dimension_numbers<[1], [0], [0], [1], [0, 0, 1, 1], [], []>} : vector<32x192xf32>, vector<192x512xf32>, vector<32x512xf32> -> vector<32x512xf32>
    %c0_4 = arith.constant 0 : index
    %c0_5 = arith.constant 0 : index
    %c0_6 = arith.constant 0 : index
    %4 = vector.load %arg4[%c0_4, %c0_5, %c0_6] : memref<1x32x1xf32, #tpu.memory_space<vmem>>, vector<1x32x1xf32>
    %5 = vector.shape_cast %4 : vector<1x32x1xf32> to vector<32x1xf32>
    %6 = vector.broadcast %5 : vector<32x1xf32> to vector<32x512xf32>
    %7 = arith.addf %3, %6 : vector<32x512xf32>
    %c0_7 = arith.constant 0 : index
    %c0_8 = arith.constant 0 : index
    %8 = vector.load %arg5[%c0_7, %c0_8] : memref<32x512xf32, #tpu.memory_space<vmem>>, vector<32x512xf32>
    tpu.vector_store %arg5[%c0_7, %c0_8], %7 {strides = array<i32>} : memref<32x512xf32, #tpu.memory_space<vmem>>, vector<32x512xf32>,
    return
  }
  func.func @transform_0(%arg0: i32, %arg1: memref<3xi32, #tpu.memory_space<smem>>) -> (i32, i32) {
    %c0_i32 = arith.constant 0 : i32
    %c0_i32_0 = arith.constant 0 : i32
    return %c0_i32, %arg0 : i32, i32
  }
  func.func @transform_1(%arg0: i32, %arg1: memref<3xi32, #tpu.memory_space<smem>>) -> (i32, i32, i32) {
    %0 = arith.index_cast %arg0 : i32 to index
    %1 = memref.load %arg1[%0] : memref<3xi32, #tpu.memory_space<smem>>
    %c0_i32 = arith.constant 0 : i32
    %c0_i32_0 = arith.constant 0 : i32
    %c0_i32_1 = arith.constant 0 : i32
    return %1, %c0_i32, %c0_i32_0 : i32, i32, i32
  }
  func.func @transform_2(%arg0: i32, %arg1: memref<3xi32, #tpu.memory_space<smem>>) -> (i32, i32, i32) {
    %0 = arith.index_cast %arg0 : i32 to index
    %1 = memref.load %arg1[%0] : memref<3xi32, #tpu.memory_space<smem>>
    %c0_i32 = arith.constant 0 : i32
    %c0_i32_0 = arith.constant 0 : i32
    %c0_i32_1 = arith.constant 0 : i32
    return %1, %c0_i32, %c0_i32_0 : i32, i32, i32
  }
  func.func @transform_3(%arg0: i32, %arg1: memref<3xi32, #tpu.memory_space<smem>>) -> (i32, i32) {
    %c0_i32 = arith.constant 0 : i32
    %c0_i32_0 = arith.constant 0 : i32
    return %c0_i32, %arg0 : i32, i32
  }
}

</mosaic_0001>

<llo_original>
// kernel: _head_forward.1
$region0: #{_head_forward.1}
  #allocation0 [shape = 'u32[]', space=smem, size = 0x4, offset = 0x4, fixed_abs, tag = 'smem constant byte address 0x4 - core index']
  #allocation1 [shape = 'u32[144,128]{1,0:T(1,128)}', space=vmem, size = 0x12000, scoped, tag = 'internal scratch']
  #allocation2 [shape = 's32[1]{0}', space=sflag, size = 0x4, scoped, tag = 'scoped memory for _head_forward.1']
  #allocation3 [shape = 'u8[512]{0}', space=smem, size = 0x200, scoped, tag = 'prefetched SMEM operand 0']
  %s0 = inlined_call_operand.vmem [shape: s32[3], index: 0, kind: input, shape index: {}]
  %s1 = inlined_call_operand.vmem [shape: f32[192,1536], index: 1, kind: input, shape index: {}]
  %s2 = inlined_call_operand.vmem [shape: f32[3,32,192], index: 2, kind: input, shape index: {}]
  %s3 = inlined_call_operand.vmem [shape: f32[3,32,1], index: 3, kind: input, shape index: {}]
  %s4 = inlined_call_operand.vmem [shape: f32[32,1536], index: 4, kind: output, shape index: {}]
  %s5 = sld [smem:[#allocation0]]
  $region87: #{_head_forward.1} parent=0
    _
  %s7 = ssub.s32 1, %s5
  %s8 = scalar_select 0, %s7, %s5
  %s9 = sshll.u32 %s0, 4
  %s10 = int_to_ptr.vmem [resolvable:$true] %s9
  %12 = dma.vmem_to_smem %s10, 16, [#allocation3], [#allocation2]
  %13 = dma.done [#allocation2], 16
  %14 = sfence
  $region1: #{_head_forward.1} parent=0
    #allocation4 [shape = 'u8[786432]{0}', space=vmem, size = 0xc0000, scoped, tag = 'input window, operand 1']
    #allocation5 [shape = 'u8[131072]{0}', space=vmem, size = 0x20000, scoped, tag = 'output window, operand 0']
    loop: start=0, step=1, limit=5
    $region2: #{_head_forward.1} parent=1 // loop_pre_header
      _
    $region3: #{_head_forward.1} parent=1 // loop_header
      %s16 = sphi 0, %s20
      %p17 = scmp.ge.s32.totalorder %s16, 5
      %s26 = sphi 0, %s28
      %s29 = sphi 0, %s26
      %s30 = sphi 0, %s29
      %s46 = sphi 0, %s30
      %s54 = sphi 0, %s56
      %s57 = sphi 0, %s54
      %s58 = sphi 0, %s57
      %s74 = sphi 0, %s58
      %s82 = sphi 0, %s84
      %s85 = sphi 0, %s82
      %s86 = sphi 0, %s85
      %s102 = sphi 0, %s86
      %s108 = sphi 0, %s110
      %s111 = sphi 0, %s108
      %s112 = sphi 0, %s111
      %s128 = sphi 0, %s112
    $region4: #{_head_forward.1} parent=1 // loop_header_branch
      %19 = sbr.rel (%p17) target = $region8
    $region5: #{_head_forward.1} parent=1 // loop_body
      %s21 = ssub.s32 %s16, 1
      %s22 = ssub.s32 %s16, 2
      %s23 = sadd.s32 %s16, 1
      %s24 = ssub.s32 %s16, %s23
      %p25 = scmp.eq.s32.totalorder %s24, 0
      %s27 = sadd.s32 %s26, 1
      %s28 = scalar_select %p25, %s26, %s27
      %p31 = pneg %p25
      %p32 = scmp.eq.s32.totalorder %s16, 2
      %p33 = por %p31, %p32
      %p34 = scmp.ne.s32.totalorder %s26, %s29
      %p35 = scmp.eq.s32.totalorder %s16, 0
      %p36 = por %p34, %p35
      %p37 = scmp.ne.s32.totalorder %s26, %s29
      %p38 = scmp.eq.s32.totalorder %s21, 2
      %p39 = por %p37, %p38
      %p40 = scmp.ne.s32.totalorder %s29, %s30
      %p41 = scmp.eq.s32.totalorder %s21, 0
      %p42 = por %p40, %p41
      %p43 = scmp.ne.s32.totalorder %s29, %s30
      %p44 = scmp.eq.s32.totalorder %s22, 2
      %p45 = por %p43, %p44
      %p47 = scmp.ne.s32.totalorder %s30, %s46
      %p48 = scmp.eq.s32.totalorder %s22, 0
      %p49 = por %p47, %p48
      %s50 = sld [smem:[#allocation3 + %s16]]
      %s51 = sld [smem:[#allocation3 + %s23]]
      %s52 = ssub.s32 %s50, %s51
      %p53 = scmp.eq.s32.totalorder %s52, 0
      %s55 = sadd.s32 %s54, 1
      %s56 = scalar_select %p53, %s54, %s55
      %p59 = pneg %p53
      %p60 = scmp.eq.s32.totalorder %s16, 2
      %p61 = por %p59, %p60
      %p62 = scmp.ne.s32.totalorder %s54, %s57
      %p63 = scmp.eq.s32.totalorder %s16, 0
      %p64 = por %p62, %p63
      %p65 = scmp.ne.s32.totalorder %s54, %s57
      %p66 = scmp.eq.s32.totalorder %s21, 2
      %p67 = por %p65, %p66
      %p68 = scmp.ne.s32.totalorder %s57, %s58
      %p69 = scmp.eq.s32.totalorder %s21, 0
      %p70 = por %p68, %p69
      %p71 = scmp.ne.s32.totalorder %s57, %s58
      %p72 = scmp.eq.s32.totalorder %s22, 2
      %p73 = por %p71, %p72
      %p75 = scmp.ne.s32.totalorder %s58, %s74
      %p76 = scmp.eq.s32.totalorder %s22, 0
      %p77 = por %p75, %p76
      %s78 = sld [smem:[#allocation3 + %s16]]
      %s79 = sld [smem:[#allocation3 + %s23]]
      %s80 = ssub.s32 %s78, %s79
      %p81 = scmp.eq.s32.totalorder %s80, 0
      %s83 = sadd.s32 %s82, 1
      %s84 = scalar_select %p81, %s82, %s83
      %p87 = pneg %p81
      %p88 = scmp.eq.s32.totalorder %s16, 2
      %p89 = por %p87, %p88
      %p90 = scmp.ne.s32.totalorder %s82, %s85
      %p91 = scmp.eq.s32.totalorder %s16, 0
      %p92 = por %p90, %p91
      %p93 = scmp.ne.s32.totalorder %s82, %s85
      %p94 = scmp.eq.s32.totalorder %s21, 2
      %p95 = por %p93, %p94
      %p96 = scmp.ne.s32.totalorder %s85, %s86
      %p97 = scmp.eq.s32.totalorder %s21, 0
      %p98 = por %p96, %p97
      %p99 = scmp.ne.s32.totalorder %s85, %s86
      %p100 = scmp.eq.s32.totalorder %s22, 2
      %p101 = por %p99, %p100
      %p103 = scmp.ne.s32.totalorder %s86, %s102
      %p104 = scmp.eq.s32.totalorder %s22, 0
      %p105 = por %p103, %p104
      %s106 = ssub.s32 %s16, %s23
      %p107 = scmp.eq.s32.totalorder %s106, 0
      %s109 = sadd.s32 %s108, 1
      %s110 = scalar_select %p107, %s108, %s109
      %p113 = pneg %p107
      %p114 = scmp.eq.s32.totalorder %s16, 2
      %p115 = por %p113, %p114
      %p116 = scmp.ne.s32.totalorder %s108, %s111
      %p117 = scmp.eq.s32.totalorder %s16, 0
      %p118 = por %p116, %p117
      %p119 = scmp.ne.s32.totalorder %s108, %s111
      %p120 = scmp.eq.s32.totalorder %s21, 2
      %p121 = por %p119, %p120
      %p122 = scmp.ne.s32.totalorder %s111, %s112
      %p123 = scmp.eq.s32.totalorder %s21, 0
      %p124 = por %p122, %p123
      %p125 = scmp.ne.s32.totalorder %s111, %s112
      %p126 = scmp.eq.s32.totalorder %s22, 2
      %p127 = por %p125, %p126
      %p129 = scmp.ne.s32.totalorder %s112, %s128
      %p130 = scmp.eq.s32.totalorder %s22, 0
      %p131 = por %p129, %p130
      %p132 = scmp.le.s32.totalorder 1, %s16
      %p133 = scmp.lt.s32.totalorder %s16, 4
      %p134 = pnand %p132, %p133
      %p135 = pneg %p134
      // Predicated region
      $region9: #{_head_forward.1} parent=5 // pred_check
        _
      $region10: #{_head_forward.1} parent=5 // pred_check_branch
        %137 = sbr.rel (%p134) target = $region12
      $region11: #{_head_forward.1} parent=5 // pred_region
        %s138 = ssub.s32 %s16, 1
      $region12: #{_head_forward.1} parent=5 // pred_fallthru
        _
      %p139 = scmp.lt.s32.totalorder %s16, 3
      // Predicated region
      $region13: #{_head_forward.1} parent=5 // pred_check
        %p140 = pneg %p139
      $region14: #{_head_forward.1} parent=5 // pred_check_branch
        %142 = sbr.rel (%p140) target = $region16
      $region15: #{_head_forward.1} parent=5 // pred_region
        // Predicated region
        $region17: #{_head_forward.1} parent=15 // pred_check
          %p143 = pneg %p36
        $region18: #{_head_forward.1} parent=15 // pred_check_branch
          %145 = sbr.rel (%p143) target = $region20
        $region19: #{_head_forward.1} parent=15 // pred_region
          %s146 = sand.u32 %s26, 1
          %s147 = sand.u32 %s26, 1
          %s148 = smul.addr %s147, 768
          %s149 = scalar_lea.vmem [#allocation4], %s148
          %s150 = smul.u32 4, %s16
          %s151 = smul.addr %s150, 8
          %s152 = scalar_lea.vmem %s1, %s151
          // Predicated region
          $region21: #{_head_forward.1} parent=19 // pred_check
            _
          $region22: #{_head_forward.1} parent=19 // pred_check_branch
            %154 = sbr.rel (0) target = $region24
          $region23: #{_head_forward.1} parent=19 // pred_region
            // Predicated region
            $region25: #{_head_forward.1} parent=23 // pred_check
              _
            $region26: #{_head_forward.1} parent=23 // pred_check_branch
              %156 = sbr.rel (0) target = $region28
            $region27: #{_head_forward.1} parent=23 // pred_region
              loop: start=0, step=1, limit=1
              $region29: #{_head_forward.1} parent=27 // loop_pre_header
                _
              $region30: #{_head_forward.1} parent=27 // loop_header
                %s158 = sphi 0, %s162
                %p159 = scmp.ge.s32.totalorder %s158, 1
                %s163 = sphi %s152, %s152
                %s164 = sphi %s149, %s149
              $region31: #{_head_forward.1} parent=27 // loop_header_branch
                %161 = sbr.rel (%p159) target = $region35
              $region32: #{_head_forward.1} parent=27 // loop_body
                %v165 = vld [vmem:[%s163] sm:$0xff]
                %166 = vst [vmem:[%s164] sm:$0xff] %v165
                %v167 = vld [vmem:[%s163 + $0x8] sm:$0xff]
                %168 = vst [vmem:[%s164 + $0x8] sm:$0xff] %v167
                %v169 = vld [vmem:[%s163 + $0x10] sm:$0xff]
                %170 = vst [vmem:[%s164 + $0x10] sm:$0xff] %v169
                %v171 = vld [vmem:[%s163 + $0x18] sm:$0xff]
                %172 = vst [vmem:[%s164 + $0x18] sm:$0xff] %v171
                %v173 = vld [vmem:[%s163 + $0x60] sm:$0xff]
                %174 = vst [vmem:[%s164 + $0x20] sm:$0xff] %v173
                %v175 = vld [vmem:[%s163 + $0x68] sm:$0xff]
                %176 = vst [vmem:[%s164 + $0x28] sm:$0xff] %v175
                %v177 = vld [vmem:[%s163 + $0x70] sm:$0xff]
                %178 = vst [vmem:[%s164 + $0x30] sm:$0xff] %v177
                %v179 = vld [vmem:[%s163 + $0x78] sm:$0xff]
                %180 = vst [vmem:[%s164 + $0x38] sm:$0xff] %v179
                %v181 = vld [vmem:[%s163 + $0xc0] sm:$0xff]
                %182 = vst [vmem:[%s164 + $0x40] sm:$0xff] %v181
                %v183 = vld [vmem:[%s163 + $0xc8] sm:$0xff]
                %184 = vst [vmem:[%s164 + $0x48] sm:$0xff] %v183
                %v185 = vld [vmem:[%s163 + $0xd0] sm:$0xff]
                %186 = vst [vmem:[%s164 + $0x50] sm:$0xff] %v185
                %v187 = vld [vmem:[%s163 + $0xd8] sm:$0xff]
                %188 = vst [vmem:[%s164 + $0x58] sm:$0xff] %v187
                %v189 = vld [vmem:[%s163 + $0x120] sm:$0xff]
                %190 = vst [vmem:[%s164 + $0x60] sm:$0xff] %v189
                %v191 = vld [vmem:[%s163 + $0x128] sm:$0xff]
                %192 = vst [vmem:[%s164 + $0x68] sm:$0xff] %v191
                %v193 = vld [vmem:[%s163 + $0x130] sm:$0xff]
                %194 = vst [vmem:[%s164 + $0x70] sm:$0xff] %v193
                %v195 = vld [vmem:[%s163 + $0x138] sm:$0xff]
                %196 = vst [vmem:[%s164 + $0x78] sm:$0xff] %v195
                %v197 = vld [vmem:[%s163 + $0x180] sm:$0xff]
                %198 = vst [vmem:[%s164 + $0x80] sm:$0xff] %v197
                %v199 = vld [vmem:[%s163 + $0x188] sm:$0xff]
                %200 = vst [vmem:[%s164 + $0x88] sm:$0xff] %v199
                %v201 = vld [vmem:[%s163 + $0x190] sm:$0xff]
                %202 = vst [vmem:[%s164 + $0x90] sm:$0xff] %v201
                %v203 = vld [vmem:[%s163 + $0x198] sm:$0xff]
                %204 = vst [vmem:[%s164 + $0x98] sm:$0xff] %v203
                %v205 = vld [vmem:[%s163 + $0x1e0] sm:$0xff]
                %206 = vst [vmem:[%s164 + $0xa0] sm:$0xff] %v205
                %v207 = vld [vmem:[%s163 + $0x1e8] sm:$0xff]
                %208 = vst [vmem:[%s164 + $0xa8] sm:$0xff] %v207
                %v209 = vld [vmem:[%s163 + $0x1f0] sm:$0xff]
                %210 = vst [vmem:[%s164 + $0xb0] sm:$0xff] %v209
                %v211 = vld [vmem:[%s163 + $0x1f8] sm:$0xff]
                %212 = vst [vmem:[%s164 + $0xb8] sm:$0xff] %v211
                %v213 = vld [vmem:[%s163 + $0x240] sm:$0xff]
                %214 = vst [vmem:[%s164 + $0xc0] sm:$0xff] %v213
                %v215 = vld [vmem:[%s163 + $0x248] sm:$0xff]
                %216 = vst [vmem:[%s164 + $0xc8] sm:$0xff] %v215
                %v217 = vld [vmem:[%s163 + $0x250] sm:$0xff]
                %218 = vst [vmem:[%s164 + $0xd0] sm:$0xff] %v217
                %v219 = vld [vmem:[%s163 + $0x258] sm:$0xff]
                %220 = vst [vmem:[%s164 + $0xd8] sm:$0xff] %v219
                %v221 = vld [vmem:[%s163 + $0x2a0] sm:$0xff]
                %222 = vst [vmem:[%s164 + $0xe0] sm:$0xff] %v221
                %v223 = vld [vmem:[%s163 + $0x2a8] sm:$0xff]
                %224 = vst [vmem:[%s164 + $0xe8] sm:$0xff] %v223
                %v225 = vld [vmem:[%s163 + $0x2b0] sm:$0xff]
                %226 = vst [vmem:[%s164 + $0xf0] sm:$0xff] %v225
                %v227 = vld [vmem:[%s163 + $0x2b8] sm:$0xff]
                %228 = vst [vmem:[%s164 + $0xf8] sm:$0xff] %v227
                %v229 = vld [vmem:[%s163 + $0x300] sm:$0xff]
                %230 = vst [vmem:[%s164 + $0x100] sm:$0xff] %v229
                %v231 = vld [vmem:[%s163 + $0x308] sm:$0xff]
                %232 = vst [vmem:[%s164 + $0x108] sm:$0xff] %v231
                %v233 = vld [vmem:[%s163 + $0x310] sm:$0xff]
                %234 = vst [vmem:[%s164 + $0x110] sm:$0xff] %v233
                %v235 = vld [vmem:[%s163 + $0x318] sm:$0xff]
                %236 = vst [vmem:[%s164 + $0x118] sm:$0xff] %v235
                %v237 = vld [vmem:[%s163 + $0x360] sm:$0xff]
                %238 = vst [vmem:[%s164 + $0x120] sm:$0xff] %v237
                %v239 = vld [vmem:[%s163 + $0x368] sm:$0xff]
                %240 = vst [vmem:[%s164 + $0x128] sm:$0xff] %v239
                %v241 = vld [vmem:[%s163 + $0x370] sm:$0xff]
                %242 = vst [vmem:[%s164 + $0x130] sm:$0xff] %v241
                %v243 = vld [vmem:[%s163 + $0x378] sm:$0xff]
                %244 = vst [vmem:[%s164 + $0x138] sm:$0xff] %v243
                %v245 = vld [vmem:[%s163 + $0x3c0] sm:$0xff]
                %246 = vst [vmem:[%s164 + $0x140] sm:$0xff] %v245
                %v247 = vld [vmem:[%s163 + $0x3c8] sm:$0xff]
                %248 = vst [vmem:[%s164 + $0x148] sm:$0xff] %v247
                %v249 = vld [vmem:[%s163 + $0x3d0] sm:$0xff]
                %250 = vst [vmem:[%s164 + $0x150] sm:$0xff] %v249
                %v251 = vld [vmem:[%s163 + $0x3d8] sm:$0xff]
                %252 = vst [vmem:[%s164 + $0x158] sm:$0xff] %v251
                %v253 = vld [vmem:[%s163 + $0x420] sm:$0xff]
                %254 = vst [vmem:[%s164 + $0x160] sm:$0xff] %v253
                %v255 = vld [vmem:[%s163 + $0x428] sm:$0xff]
                %256 = vst [vmem:[%s164 + $0x168] sm:$0xff] %v255
                %v257 = vld [vmem:[%s163 + $0x430] sm:$0xff]
                %258 = vst [vmem:[%s164 + $0x170] sm:$0xff] %v257
                %v259 = vld [vmem:[%s163 + $0x438] sm:$0xff]
                %260 = vst [vmem:[%s164 + $0x178] sm:$0xff] %v259
                %v261 = vld [vmem:[%s163 + $0x480] sm:$0xff]
                %262 = vst [vmem:[%s164 + $0x180] sm:$0xff] %v261
                %v263 = vld [vmem:[%s163 + $0x488] sm:$0xff]
                %264 = vst [vmem:[%s164 + $0x188] sm:$0xff] %v263
                %v265 = vld [vmem:[%s163 + $0x490] sm:$0xff]
                %266 = vst [vmem:[%s164 + $0x190] sm:$0xff] %v265
                %v267 = vld [vmem:[%s163 + $0x498] sm:$0xff]
                %268 = vst [vmem:[%s164 + $0x198] sm:$0xff] %v267
                %v269 = vld [vmem:[%s163 + $0x4e0] sm:$0xff]
                %270 = vst [vmem:[%s164 + $0x1a0] sm:$0xff] %v269
                %v271 = vld [vmem:[%s163 + $0x4e8] sm:$0xff]
                %272 = vst [vmem:[%s164 + $0x1a8] sm:$0xff] %v271
                %v273 = vld [vmem:[%s163 + $0x4f0] sm:$0xff]
                %274 = vst [vmem:[%s164 + $0x1b0] sm:$0xff] %v273
                %v275 = vld [vmem:[%s163 + $0x4f8] sm:$0xff]
                %276 = vst [vmem:[%s164 + $0x1b8] sm:$0xff] %v275
                %v277 = vld [vmem:[%s163 + $0x540] sm:$0xff]
                %278 = vst [vmem:[%s164 + $0x1c0] sm:$0xff] %v277
                %v279 = vld [vmem:[%s163 + $0x548] sm:$0xff]
                %280 = vst [vmem:[%s164 + $0x1c8] sm:$0xff] %v279
                %v281 = vld [vmem:[%s163 + $0x550] sm:$0xff]
                %282 = vst [vmem:[%s164 + $0x1d0] sm:$0xff] %v281
                %v283 = vld [vmem:[%s163 + $0x558] sm:$0xff]
                %284 = vst [vmem:[%s164 + $0x1d8] sm:$0xff] %v283
                %v285 = vld [vmem:[%s163 + $0x5a0] sm:$0xff]
                %286 = vst [vmem:[%s164 + $0x1e0] sm:$0xff] %v285
                %v287 = vld [vmem:[%s163 + $0x5a8] sm:$0xff]
                %288 = vst [vmem:[%s164 + $0x1e8] sm:$0xff] %v287
                %v289 = vld [vmem:[%s163 + $0x5b0] sm:$0xff]
                %290 = vst [vmem:[%s164 + $0x1f0] sm:$0xff] %v289
                %v291 = vld [vmem:[%s163 + $0x5b8] sm:$0xff]
                %292 = vst [vmem:[%s164 + $0x1f8] sm:$0xff] %v291
                %v293 = vld [vmem:[%s163 + $0x600] sm:$0xff]
                %294 = vst [vmem:[%s164 + $0x200] sm:$0xff] %v293
                %v295 = vld [vmem:[%s163 + $0x608] sm:$0xff]
                %296 = vst [vmem:[%s164 + $0x208] sm:$0xff] %v295
                %v297 = vld [vmem:[%s163 + $0x610] sm:$0xff]
                %298 = vst [vmem:[%s164 + $0x210] sm:$0xff] %v297
                %v299 = vld [vmem:[%s163 + $0x618] sm:$0xff]
                %300 = vst [vmem:[%s164 + $0x218] sm:$0xff] %v299
                %v301 = vld [vmem:[%s163 + $0x660] sm:$0xff]
                %302 = vst [vmem:[%s164 + $0x220] sm:$0xff] %v301
                %v303 = vld [vmem:[%s163 + $0x668] sm:$0xff]
                %304 = vst [vmem:[%s164 + $0x228] sm:$0xff] %v303
                %v305 = vld [vmem:[%s163 + $0x670] sm:$0xff]
                %306 = vst [vmem:[%s164 + $0x230] sm:$0xff] %v305
                %v307 = vld [vmem:[%s163 + $0x678] sm:$0xff]
                %308 = vst [vmem:[%s164 + $0x238] sm:$0xff] %v307
                %v309 = vld [vmem:[%s163 + $0x6c0] sm:$0xff]
                %310 = vst [vmem:[%s164 + $0x240] sm:$0xff] %v309
                %v311 = vld [vmem:[%s163 + $0x6c8] sm:$0xff]
                %312 = vst [vmem:[%s164 + $0x248] sm:$0xff] %v311
                %v313 = vld [vmem:[%s163 + $0x6d0] sm:$0xff]
                %314 = vst [vmem:[%s164 + $0x250] sm:$0xff] %v313
                %v315 = vld [vmem:[%s163 + $0x6d8] sm:$0xff]
                %316 = vst [vmem:[%s164 + $0x258] sm:$0xff] %v315
                %v317 = vld [vmem:[%s163 + $0x720] sm:$0xff]
                %318 = vst [vmem:[%s164 + $0x260] sm:$0xff] %v317
                %v319 = vld [vmem:[%s163 + $0x728] sm:$0xff]
                %320 = vst [vmem:[%s164 + $0x268] sm:$0xff] %v319
                %v321 = vld [vmem:[%s163 + $0x730] sm:$0xff]
                %322 = vst [vmem:[%s164 + $0x270] sm:$0xff] %v321
                %v323 = vld [vmem:[%s163 + $0x738] sm:$0xff]
                %324 = vst [vmem:[%s164 + $0x278] sm:$0xff] %v323
                %v325 = vld [vmem:[%s163 + $0x780] sm:$0xff]
                %326 = vst [vmem:[%s164 + $0x280] sm:$0xff] %v325
                %v327 = vld [vmem:[%s163 + $0x788] sm:$0xff]
                %328 = vst [vmem:[%s164 + $0x288] sm:$0xff] %v327
                %v329 = vld [vmem:[%s163 + $0x790] sm:$0xff]
                %330 = vst [vmem:[%s164 + $0x290] sm:$0xff] %v329
                %v331 = vld [vmem:[%s163 + $0x798] sm:$0xff]
                %332 = vst [vmem:[%s164 + $0x298] sm:$0xff] %v331
                %v333 = vld [vmem:[%s163 + $0x7e0] sm:$0xff]
                %334 = vst [vmem:[%s164 + $0x2a0] sm:$0xff] %v333
                %v335 = vld [vmem:[%s163 + $0x7e8] sm:$0xff]
                %336 = vst [vmem:[%s164 + $0x2a8] sm:$0xff] %v335
                %v337 = vld [vmem:[%s163 + $0x7f0] sm:$0xff]
                %338 = vst [vmem:[%s164 + $0x2b0] sm:$0xff] %v337
                %v339 = vld [vmem:[%s163 + $0x7f8] sm:$0xff]
                %340 = vst [vmem:[%s164 + $0x2b8] sm:$0xff] %v339
                %v341 = vld [vmem:[%s163 + $0x840] sm:$0xff]
                %342 = vst [vmem:[%s164 + $0x2c0] sm:$0xff] %v341
                %v343 = vld [vmem:[%s163 + $0x848] sm:$0xff]
                %344 = vst [vmem:[%s164 + $0x2c8] sm:$0xff] %v343
                %v345 = vld [vmem:[%s163 + $0x850] sm:$0xff]
                %346 = vst [vmem:[%s164 + $0x2d0] sm:$0xff] %v345
                %v347 = vld [vmem:[%s163 + $0x858] sm:$0xff]
                %348 = vst [vmem:[%s164 + $0x2d8] sm:$0xff] %v347
                %v349 = vld [vmem:[%s163 + $0x8a0] sm:$0xff]
                %350 = vst [vmem:[%s164 + $0x2e0] sm:$0xff] %v349
                %v351 = vld [vmem:[%s163 + $0x8a8] sm:$0xff]
                %352 = vst [vmem:[%s164 + $0x2e8] sm:$0xff] %v351
                %v353 = vld [vmem:[%s163 + $0x8b0] sm:$0xff]
                %354 = vst [vmem:[%s164 + $0x2f0] sm:$0xff] %v353
                %v355 = vld [vmem:[%s163 + $0x8b8] sm:$0xff]
                %356 = vst [vmem:[%s164 + $0x2f8] sm:$0xff] %v355
              $region33: #{_head_forward.1} parent=27 // loop_footer
                %s162 = sadd.s32 1, %s158
              $region34: #{_head_forward.1} parent=27 // loop_footer_branch
                %157 = sbr.rel target = $region30
              $region35: #{_head_forward.1} parent=27 // loop_exit
                _
            $region28: #{_head_forward.1} parent=23 // pred_fallthru
              _
            // Predicated region
            $region36: #{_head_forward.1} parent=23 // pred_check
              _
            $region37: #{_head_forward.1} parent=23 // pred_check_branch
              %358 = sbr.rel target = $region39
            $region38: #{_head_forward.1} parent=23 // pred_region
              _
            $region39: #{_head_forward.1} parent=23 // pred_fallthru
              _
          $region24: #{_head_forward.1} parent=19 // pred_fallthru
            _
          %359 = vnop
        $region20: #{_head_forward.1} parent=15 // pred_fallthru
          _
        // Predicated region
        $region40: #{_head_forward.1} parent=15 // pred_check
          %p360 = pneg %p64
        $region41: #{_head_forward.1} parent=15 // pred_check_branch
          %362 = sbr.rel (%p360) target = $region43
        $region42: #{_head_forward.1} parent=15 // pred_region
          %s363 = sld [smem:[#allocation3 + %s16]]
          %p364 = scmp.lt.s32.totalorder %s363, 2
          %s365 = scalar_select %p364, %s363, 2
          %s366 = smul.addr %s365, 8
          %s367 = smul.addr %s366, 8
          %s368 = scalar_lea.vmem %s2, %s367
          %s369 = sld [smem:[#allocation3 + %s16]]
        $region43: #{_head_forward.1} parent=15 // pred_fallthru
          _
        // Predicated region
        $region44: #{_head_forward.1} parent=15 // pred_check
          %p370 = pneg %p92
        $region45: #{_head_forward.1} parent=15 // pred_check_branch
          %372 = sbr.rel (%p370) target = $region47
        $region46: #{_head_forward.1} parent=15 // pred_region
          %s373 = sld [smem:[#allocation3 + %s16]]
          %p374 = scmp.lt.s32.totalorder %s373, 2
          %s375 = scalar_select %p374, %s373, 2
          %s376 = smul.addr %s375, 4
          %s377 = smul.addr %s376, 8
          %s378 = scalar_lea.vmem %s3, %s377
          %s379 = sld [smem:[#allocation3 + %s16]]
        $region47: #{_head_forward.1} parent=15 // pred_fallthru
          _
      $region16: #{_head_forward.1} parent=5 // pred_fallthru
        _
      %p380 = scmp.le.s32.totalorder 1, %s16
      %p381 = scmp.lt.s32.totalorder %s16, 4
      %p382 = pnand %p380, %p381
      %p383 = pneg %p382
      // Predicated region
      $region48: #{_head_forward.1} parent=5 // pred_check
        _
      $region49: #{_head_forward.1} parent=5 // pred_check_branch
        %385 = sbr.rel (%p382) target = $region51
      $region50: #{_head_forward.1} parent=5 // pred_region
        %s386 = ssub.s32 %s16, 1
        %s387 = sand.u32 %s29, 1
        %s388 = sand.u32 %s29, 1
        %s389 = smul.addr %s388, 768
        %s390 = scalar_lea.vmem [#allocation4], %s389
        // Predicated region
        $region52: #{_head_forward.1} parent=50 // pred_check
          %p391 = pneg %p42
        $region53: #{_head_forward.1} parent=50 // pred_check_branch
          %393 = sbr.rel (%p391) target = $region55
        $region54: #{_head_forward.1} parent=50 // pred_region
          _
        $region55: #{_head_forward.1} parent=50 // pred_fallthru
          _
        %s394 = sand.u32 %s29, 1
        %s395 = sand.u32 %s29, 1
        %s396 = smul.addr %s395, 768
        %s397 = scalar_lea.vmem [#allocation4], %s396
        %p398 = pneg %p42
        %p399 = pneg %p39
        %s400 = sld [smem:[#allocation3 + %s21]]
        %p401 = scmp.lt.s32.totalorder %s400, 2
        %s402 = scalar_select %p401, %s400, 2
        %s403 = smul.addr %s402, 8
        %s404 = smul.addr %s403, 8
        %s405 = scalar_lea.vmem %s2, %s404
        %p406 = pneg %p70
        %p407 = pneg %p67
        %s408 = sld [smem:[#allocation3 + %s21]]
        %p409 = scmp.lt.s32.totalorder %s408, 2
        %s410 = scalar_select %p409, %s408, 2
        %s411 = smul.addr %s410, 4
        %s412 = smul.addr %s411, 8
        %s413 = scalar_lea.vmem %s3, %s412
        %p414 = pneg %p98
        %p415 = pneg %p95
        %p416 = pneg %p124
        %p417 = pneg %p121
        %s418 = sand.u32 %s111, 1
        %s419 = sand.u32 %s111, 1
        %s420 = smul.addr %s419, 128
        %s421 = scalar_lea.vmem [#allocation5], %s420
        %s422 = smul.u32 4, %s21
        %s423 = sld [smem:[#allocation3 + %s21]]
        %p424 = scmp.lt.s32.totalorder %s423, 2
        %s425 = scalar_select %p424, %s423, 2
        %s426 = smul.addr %s425, 8
        %s427 = smul.addr %s426, 8
        %s428 = scalar_lea.vmem %s2, %s427
        %s429 = sld [smem:[#allocation3 + %s21]]
        %s430 = sld [smem:[#allocation3 + %s21]]
        %p431 = scmp.lt.s32.totalorder %s430, 2
        %s432 = scalar_select %p431, %s430, 2
        %s433 = smul.addr %s432, 4
        %s434 = smul.addr %s433, 8
        %s435 = scalar_lea.vmem %s3, %s434
        %s436 = sld [smem:[#allocation3 + %s21]]
        %s437 = smul.u32 4, %s21
        %v438 = vld [vmem:[%s428] sm:$0xff]
        %v439 = vld [vmem:[%s428 + $0x8] sm:$0xff]
        %v440 = vld [vmem:[%s428 + $0x10] sm:$0xff]
        %v441 = vld [vmem:[%s428 + $0x18] sm:$0xff]
        %v442 = vld [vmem:[%s428 + $0x20] sm:$0xff]
        %v443 = vld [vmem:[%s428 + $0x28] sm:$0xff]
        %v444 = vld [vmem:[%s428 + $0x30] sm:$0xff]
        %v445 = vld [vmem:[%s428 + $0x38] sm:$0xff]
        %v446 = vld [vmem:[%s390] sm:$0xff]
        %v447 = vld [vmem:[%s390 + $0x8] sm:$0xff]
        %v448 = vld [vmem:[%s390 + $0x10] sm:$0xff]
        %v449 = vld [vmem:[%s390 + $0x18] sm:$0xff]
        %v450 = vld [vmem:[%s390 + $0x20] sm:$0xff]
        %v451 = vld [vmem:[%s390 + $0x28] sm:$0xff]
        %v452 = vld [vmem:[%s390 + $0x30] sm:$0xff]
        %v453 = vld [vmem:[%s390 + $0x38] sm:$0xff]
        %v454 = vld [vmem:[%s390 + $0x40] sm:$0xff]
        %v455 = vld [vmem:[%s390 + $0x48] sm:$0xff]
        %v456 = vld [vmem:[%s390 + $0x50] sm:$0xff]
        %v457 = vld [vmem:[%s390 + $0x58] sm:$0xff]
        %v458 = vld [vmem:[%s390 + $0x60] sm:$0xff]
        %v459 = vld [vmem:[%s390 + $0x68] sm:$0xff]
        %v460 = vld [vmem:[%s390 + $0x70] sm:$0xff]
        %v461 = vld [vmem:[%s390 + $0x78] sm:$0xff]
        %v462 = vld [vmem:[%s390 + $0x80] sm:$0xff]
        %v463 = vld [vmem:[%s390 + $0x88] sm:$0xff]
        %v464 = vld [vmem:[%s390 + $0x90] sm:$0xff]
        %v465 = vld [vmem:[%s390 + $0x98] sm:$0xff]
        %v466 = vld [vmem:[%s390 + $0xa0] sm:$0xff]
        %v467 = vld [vmem:[%s390 + $0xa8] sm:$0xff]
        %v468 = vld [vmem:[%s390 + $0xb0] sm:$0xff]
        %v469 = vld [vmem:[%s390 + $0xb8] sm:$0xff]
        %v470 = vld [vmem:[%s390 + $0xc0] sm:$0xff]
        %v471 = vld [vmem:[%s390 + $0xc8] sm:$0xff]
        %v472 = vld [vmem:[%s390 + $0xd0] sm:$0xff]
        %v473 = vld [vmem:[%s390 + $0xd8] sm:$0xff]
        %v474 = vld [vmem:[%s390 + $0xe0] sm:$0xff]
        %v475 = vld [vmem:[%s390 + $0xe8] sm:$0xff]
        %v476 = vld [vmem:[%s390 + $0xf0] sm:$0xff]
        %v477 = vld [vmem:[%s390 + $0xf8] sm:$0xff]
        %v478 = vld [vmem:[%s390 + $0x100] sm:$0xff]
        %v479 = vld [vmem:[%s390 + $0x108] sm:$0xff]
        %v480 = vld [vmem:[%s390 + $0x110] sm:$0xff]
        %v481 = vld [vmem:[%s390 + $0x118] sm:$0xff]
        %v482 = vld [vmem:[%s390 + $0x120] sm:$0xff]
        %v483 = vld [vmem:[%s390 + $0x128] sm:$0xff]
        %v484 = vld [vmem:[%s390 + $0x130] sm:$0xff]
        %v485 = vld [vmem:[%s390 + $0x138] sm:$0xff]
        %v486 = vld [vmem:[%s390 + $0x140] sm:$0xff]
        %v487 = vld [vmem:[%s390 + $0x148] sm:$0xff]
        %v488 = vld [vmem:[%s390 + $0x150] sm:$0xff]
        %v489 = vld [vmem:[%s390 + $0x158] sm:$0xff]
        %v490 = vld [vmem:[%s390 + $0x160] sm:$0xff]
        %v491 = vld [vmem:[%s390 + $0x168] sm:$0xff]
        %v492 = vld [vmem:[%s390 + $0x170] sm:$0xff]
        %v493 = vld [vmem:[%s390 + $0x178] sm:$0xff]
        %v494 = vld [vmem:[%s390 + $0x180] sm:$0xff]
        %v495 = vld [vmem:[%s390 + $0x188] sm:$0xff]
        %v496 = vld [vmem:[%s390 + $0x190] sm:$0xff]
        %v497 = vld [vmem:[%s390 + $0x198] sm:$0xff]
        %v498 = vld [vmem:[%s390 + $0x1a0] sm:$0xff]
        %v499 = vld [vmem:[%s390 + $0x1a8] sm:$0xff]
        %v500 = vld [vmem:[%s390 + $0x1b0] sm:$0xff]
        %v501 = vld [vmem:[%s390 + $0x1b8] sm:$0xff]
        %v502 = vld [vmem:[%s390 + $0x1c0] sm:$0xff]
        %v503 = vld [vmem:[%s390 + $0x1c8] sm:$0xff]
        %v504 = vld [vmem:[%s390 + $0x1d0] sm:$0xff]
        %v505 = vld [vmem:[%s390 + $0x1d8] sm:$0xff]
        %v506 = vld [vmem:[%s390 + $0x1e0] sm:$0xff]
        %v507 = vld [vmem:[%s390 + $0x1e8] sm:$0xff]
        %v508 = vld [vmem:[%s390 + $0x1f0] sm:$0xff]
        %v509 = vld [vmem:[%s390 + $0x1f8] sm:$0xff]
        %v510 = vld [vmem:[%s390 + $0x200] sm:$0xff]
        %v511 = vld [vmem:[%s390 + $0x208] sm:$0xff]
        %v512 = vld [vmem:[%s390 + $0x210] sm:$0xff]
        %v513 = vld [vmem:[%s390 + $0x218] sm:$0xff]
        %v514 = vld [vmem:[%s390 + $0x220] sm:$0xff]
        %v515 = vld [vmem:[%s390 + $0x228] sm:$0xff]
        %v516 = vld [vmem:[%s390 + $0x230] sm:$0xff]
        %v517 = vld [vmem:[%s390 + $0x238] sm:$0xff]
        %v518 = vld [vmem:[%s390 + $0x240] sm:$0xff]
        %v519 = vld [vmem:[%s390 + $0x248] sm:$0xff]
        %v520 = vld [vmem:[%s390 + $0x250] sm:$0xff]
        %v521 = vld [vmem:[%s390 + $0x258] sm:$0xff]
        %v522 = vld [vmem:[%s390 + $0x260] sm:$0xff]
        %v523 = vld [vmem:[%s390 + $0x268] sm:$0xff]
        %v524 = vld [vmem:[%s390 + $0x270] sm:$0xff]
        %v525 = vld [vmem:[%s390 + $0x278] sm:$0xff]
        %v526 = vld [vmem:[%s390 + $0x280] sm:$0xff]
        %v527 = vld [vmem:[%s390 + $0x288] sm:$0xff]
        %v528 = vld [vmem:[%s390 + $0x290] sm:$0xff]
        %v529 = vld [vmem:[%s390 + $0x298] sm:$0xff]
        %v530 = vld [vmem:[%s390 + $0x2a0] sm:$0xff]
        %v531 = vld [vmem:[%s390 + $0x2a8] sm:$0xff]
        %v532 = vld [vmem:[%s390 + $0x2b0] sm:$0xff]
        %v533 = vld [vmem:[%s390 + $0x2b8] sm:$0xff]
        %v534 = vld [vmem:[%s390 + $0x2c0] sm:$0xff]
        %v535 = vld [vmem:[%s390 + $0x2c8] sm:$0xff]
        %v536 = vld [vmem:[%s390 + $0x2d0] sm:$0xff]
        %v537 = vld [vmem:[%s390 + $0x2d8] sm:$0xff]
        %v538 = vld [vmem:[%s390 + $0x2e0] sm:$0xff]
        %v539 = vld [vmem:[%s390 + $0x2e8] sm:$0xff]
        %v540 = vld [vmem:[%s390 + $0x2f0] sm:$0xff]
        %v541 = vld [vmem:[%s390 + $0x2f8] sm:$0xff]
        %v542 = vld [vmem:[%s435] sm:$0xff]
        %v543 = vld [vmem:[%s435 + $0x8] sm:$0xff]
        %v544 = vld [vmem:[%s435 + $0x10] sm:$0xff]
        %v545 = vld [vmem:[%s435 + $0x18] sm:$0xff]
        %547 = vset.pattern.permute.xlu0 0
        %548 = vperm.xlu0 %547, %v542
        %v549 = vpop.permute.xlu0 %548
        %552 = vset.pattern.permute.xlu0 0
        %553 = vperm.xlu0 %552, %v543
        %v554 = vpop.permute.xlu0 %553
        %557 = vset.pattern.permute.xlu0 0
        %558 = vperm.xlu0 %557, %v544
        %v559 = vpop.permute.xlu0 %558
        %562 = vset.pattern.permute.xlu0 0
        %563 = vperm.xlu0 %562, %v545
        %v564 = vpop.permute.xlu0 %563
        %vm566 = vcmask 523264
        %v568 = vsel %vm566, %v439, 0
        %v571 = vsel %vm566, %v441, 0
        %v574 = vsel %vm566, %v443, 0
        %v577 = vsel %vm566, %v445, 0
        %579 = vmatprep.subr.mxu0 %v507
        %580 = vmatpush1.msra.mxu0 %v506
        %581 = vmatprep.subr.mxu0 %v503
        %582 = vmatpush1.msra.mxu0 %v502
        %583 = vmatprep.subr.mxu0 %v499
        %584 = vmatpush1.msra.mxu0 %v498
        %585 = vmatprep.subr.mxu0 %v495
        %586 = vmatpush1.msra.mxu0 %v494
        %587 = vmatprep.subr.mxu0 %v491
        %588 = vmatpush1.msra.mxu0 %v490
        %589 = vmatprep.subr.mxu0 %v487
        %590 = vmatpush1.msra.mxu0 %v486
        %591 = vmatprep.subr.mxu0 %v483
        %592 = vmatpush1.msra.mxu0 %v482
        %593 = vmatprep.subr.mxu0 %v479
        %594 = vmatpush1.msra.mxu0 %v478
        %595 = vmatprep.subr.mxu0 %v475
        %596 = vmatpush1.msra.mxu0 %v474
        %597 = vmatprep.subr.mxu0 %v471
        %598 = vmatpush1.msra.mxu0 %v470
        %599 = vmatprep.subr.mxu0 %v467
        %600 = vmatpush1.msra.mxu0 %v466
        %601 = vmatprep.subr.mxu0 %v463
        %602 = vmatpush1.msra.mxu0 %v462
        %603 = vmatprep.subr.mxu0 %v459
        %604 = vmatpush1.msra.mxu0 %v458
        %605 = vmatprep.subr.mxu0 %v455
        %606 = vmatpush1.msra.mxu0 %v454
        %607 = vmatprep.subr.mxu0 %v451
        %608 = vmatpush1.msra.mxu0 %v450
        %609 = vmatprep.subr.mxu0 %v447
        %610 = vmatpush1.msra.mxu0 %v446
        %611 = vmatprep.subr.mxu0 0.0
        %612 = vmatpush2.msra.mxu0 0.0
        %613 = vmatprep.subr.mxu0 0.0
        %614 = vmatpush2.msra.mxu0 0.0
        %615 = vmatprep.subr.mxu0 0.0
        %616 = vmatpush2.msra.mxu0 0.0
        %617 = vmatprep.subr.mxu0 0.0
        %618 = vmatpush2.msra.mxu0 0.0
        %619 = vmatprep.subr.mxu0 0.0
        %620 = vmatpush2.msra.mxu0 0.0
        %621 = vmatprep.subr.mxu0 0.0
        %622 = vmatpush2.msra.mxu0 0.0
        %623 = vmatprep.subr.mxu0 0.0
        %624 = vmatpush2.msra.mxu0 0.0
        %625 = vmatprep.subr.mxu0 0.0
        %626 = vmatpush2.msra.mxu0 0.0
        %627 = vmatprep.subr.mxu0 %v539
        %628 = vmatpush2.msra.mxu0 %v538
        %629 = vmatprep.subr.mxu0 %v535
        %630 = vmatpush2.msra.mxu0 %v534
        %631 = vmatprep.subr.mxu0 %v531
        %632 = vmatpush2.msra.mxu0 %v530
        %633 = vmatprep.subr.mxu0 %v527
        %634 = vmatpush2.msra.mxu0 %v526
        %635 = vmatprep.subr.mxu0 %v523
        %636 = vmatpush2.msra.mxu0 %v522
        %637 = vmatprep.subr.mxu0 %v519
        %638 = vmatpush2.msra.mxu0 %v518
        %639 = vmatprep.subr.mxu0 %v515
        %640 = vmatpush2.msra.mxu0 %v514
        %641 = vmatprep.subr.mxu0 %v511
        %642 = vmatpush2.msra.mxu0 %v510
        %643 = vmatprep.mubr.f32.mxu0 %v568
        %644 = vmatmul.mubr.f32.gmra.mxu0 %v438
        %v645 = vpop.f32.mrf.mxu0
        %v646 = vadd.f32 %v549, %v645
        %v647 = vpop.f32.mrf.mxu0
        %v648 = vadd.f32 %v549, %v647
        %649 = vmatprep.mubr.f32.mxu0 %v571
        %650 = vmatmul.mubr.f32.gmra.mxu0 %v440
        %v651 = vpop.f32.mrf.mxu0
        %v652 = vadd.f32 %v554, %v651
        %v653 = vpop.f32.mrf.mxu0
        %v654 = vadd.f32 %v554, %v653
        %655 = vmatprep.mubr.f32.mxu0 %v574
        %656 = vmatmul.mubr.f32.gmra.mxu0 %v442
        %v657 = vpop.f32.mrf.mxu0
        %v658 = vadd.f32 %v559, %v657
        %v659 = vpop.f32.mrf.mxu0
        %v660 = vadd.f32 %v559, %v659
        %661 = vmatprep.mubr.f32.mxu0 %v577
        %662 = vmatmul.mubr.f32.gmra.mxu0 %v444
        %v663 = vpop.f32.mrf.mxu0
        %v664 = vadd.f32 %v564, %v663
        %v665 = vpop.f32.mrf.mxu0
        %v666 = vadd.f32 %v564, %v665
        %667 = vdwg.mxu0
        %668 = vmatprep.subr.mxu0 %v509
        %669 = vmatpush1.msra.mxu0 %v508
        %670 = vmatprep.subr.mxu0 %v505
        %671 = vmatpush1.msra.mxu0 %v504
        %672 = vmatprep.subr.mxu0 %v501
        %673 = vmatpush1.msra.mxu0 %v500
        %674 = vmatprep.subr.mxu0 %v497
        %675 = vmatpush1.msra.mxu0 %v496
        %676 = vmatprep.subr.mxu0 %v493
        %677 = vmatpush1.msra.mxu0 %v492
        %678 = vmatprep.subr.mxu0 %v489
        %679 = vmatpush1.msra.mxu0 %v488
        %680 = vmatprep.subr.mxu0 %v485
        %681 = vmatpush1.msra.mxu0 %v484
        %682 = vmatprep.subr.mxu0 %v481
        %683 = vmatpush1.msra.mxu0 %v480
        %684 = vmatprep.subr.mxu0 %v477
        %685 = vmatpush1.msra.mxu0 %v476
        %686 = vmatprep.subr.mxu0 %v473
        %687 = vmatpush1.msra.mxu0 %v472
        %688 = vmatprep.subr.mxu0 %v469
        %689 = vmatpush1.msra.mxu0 %v468
        %690 = vmatprep.subr.mxu0 %v465
        %691 = vmatpush1.msra.mxu0 %v464
        %692 = vmatprep.subr.mxu0 %v461
        %693 = vmatpush1.msra.mxu0 %v460
        %694 = vmatprep.subr.mxu0 %v457
        %695 = vmatpush1.msra.mxu0 %v456
        %696 = vmatprep.subr.mxu0 %v453
        %697 = vmatpush1.msra.mxu0 %v452
        %698 = vmatprep.subr.mxu0 %v449
        %699 = vmatpush1.msra.mxu0 %v448
        %700 = vmatprep.subr.mxu0 0.0
        %701 = vmatpush2.msra.mxu0 0.0
        %702 = vmatprep.subr.mxu0 0.0
        %703 = vmatpush2.msra.mxu0 0.0
        %704 = vmatprep.subr.mxu0 0.0
        %705 = vmatpush2.msra.mxu0 0.0
        %706 = vmatprep.subr.mxu0 0.0
        %707 = vmatpush2.msra.mxu0 0.0
        %708 = vmatprep.subr.mxu0 0.0
        %709 = vmatpush2.msra.mxu0 0.0
        %710 = vmatprep.subr.mxu0 0.0
        %711 = vmatpush2.msra.mxu0 0.0
        %712 = vmatprep.subr.mxu0 0.0
        %713 = vmatpush2.msra.mxu0 0.0
        %714 = vmatprep.subr.mxu0 0.0
        %715 = vmatpush2.msra.mxu0 0.0
        %716 = vmatprep.subr.mxu0 %v541
        %717 = vmatpush2.msra.mxu0 %v540
        %718 = vmatprep.subr.mxu0 %v537
        %719 = vmatpush2.msra.mxu0 %v536
        %720 = vmatprep.subr.mxu0 %v533
        %721 = vmatpush2.msra.mxu0 %v532
        %722 = vmatprep.subr.mxu0 %v529
        %723 = vmatpush2.msra.mxu0 %v528
        %724 = vmatprep.subr.mxu0 %v525
        %725 = vmatpush2.msra.mxu0 %v524
        %726 = vmatprep.subr.mxu0 %v521
        %727 = vmatpush2.msra.mxu0 %v520
        %728 = vmatprep.subr.mxu0 %v517
        %729 = vmatpush2.msra.mxu0 %v516
        %730 = vmatprep.subr.mxu0 %v513
        %731 = vmatpush2.msra.mxu0 %v512
        %732 = vmatprep.mubr.f32.mxu0 %v568
        %733 = vmatmul.mubr.f32.gmra.mxu0 %v438
        %v734 = vpop.f32.mrf.mxu0
        %v735 = vadd.f32 %v549, %v734
        %v736 = vpop.f32.mrf.mxu0
        %v737 = vadd.f32 %v549, %v736
        %738 = vmatprep.mubr.f32.mxu0 %v571
        %739 = vmatmul.mubr.f32.gmra.mxu0 %v440
        %v740 = vpop.f32.mrf.mxu0
        %v741 = vadd.f32 %v554, %v740
        %v742 = vpop.f32.mrf.mxu0
        %v743 = vadd.f32 %v554, %v742
        %744 = vmatprep.mubr.f32.mxu0 %v574
        %745 = vmatmul.mubr.f32.gmra.mxu0 %v442
        %v746 = vpop.f32.mrf.mxu0
        %v747 = vadd.f32 %v559, %v746
        %v748 = vpop.f32.mrf.mxu0
        %v749 = vadd.f32 %v559, %v748
        %750 = vmatprep.mubr.f32.mxu0 %v577
        %751 = vmatmul.mubr.f32.gmra.mxu0 %v444
        %v752 = vpop.f32.mrf.mxu0
        %v753 = vadd.f32 %v564, %v752
        %v754 = vpop.f32.mrf.mxu0
        %v755 = vadd.f32 %v564, %v754
        %756 = vdwg.mxu0
        %757 = vst [vmem:[%s421] sm:$0xff] %v646
        %758 = vst [vmem:[%s421 + $0x8] sm:$0xff] %v648
        %759 = vst [vmem:[%s421 + $0x10] sm:$0xff] %v735
        %760 = vst [vmem:[%s421 + $0x18] sm:$0xff] %v737
        %761 = vst [vmem:[%s421 + $0x20] sm:$0xff] %v652
        %762 = vst [vmem:[%s421 + $0x28] sm:$0xff] %v654
        %763 = vst [vmem:[%s421 + $0x30] sm:$0xff] %v741
        %764 = vst [vmem:[%s421 + $0x38] sm:$0xff] %v743
        %765 = vst [vmem:[%s421 + $0x40] sm:$0xff] %v658
        %766 = vst [vmem:[%s421 + $0x48] sm:$0xff] %v660
        %767 = vst [vmem:[%s421 + $0x50] sm:$0xff] %v747
        %768 = vst [vmem:[%s421 + $0x58] sm:$0xff] %v749
        %769 = vst [vmem:[%s421 + $0x60] sm:$0xff] %v664
        %770 = vst [vmem:[%s421 + $0x68] sm:$0xff] %v666
        %771 = vst [vmem:[%s421 + $0x70] sm:$0xff] %v753
        %772 = vst [vmem:[%s421 + $0x78] sm:$0xff] %v755
        %s773 = sand.u32 %s111, 1
        %s774 = sand.u32 %s111, 1
        %s775 = smul.addr %s774, 128
        %s776 = scalar_lea.vmem [#allocation5], %s775
        // Predicated region
        $region56: #{_head_forward.1} parent=50 // pred_check
          %p777 = pneg %p121
        $region57: #{_head_forward.1} parent=50 // pred_check_branch
          %779 = sbr.rel (%p777) target = $region59
        $region58: #{_head_forward.1} parent=50 // pred_region
          %s780 = smul.u32 4, %s21
          %s781 = smul.addr %s780, 8
          %s782 = scalar_lea.vmem %s4, %s781
          // Predicated region
          $region60: #{_head_forward.1} parent=58 // pred_check
            _
          $region61: #{_head_forward.1} parent=58 // pred_check_branch
            %784 = sbr.rel (0) target = $region63
          $region62: #{_head_forward.1} parent=58 // pred_region
            // Predicated region
            $region64: #{_head_forward.1} parent=62 // pred_check
              _
            $region65: #{_head_forward.1} parent=62 // pred_check_branch
              %786 = sbr.rel (0) target = $region67
            $region66: #{_head_forward.1} parent=62 // pred_region
              loop: start=0, step=1, limit=1
              $region68: #{_head_forward.1} parent=66 // loop_pre_header
                _
              $region69: #{_head_forward.1} parent=66 // loop_header
                %s788 = sphi 0, %s792
                %p789 = scmp.ge.s32.totalorder %s788, 1
                %s793 = sphi %s776, %s776
                %s794 = sphi %s782, %s782
              $region70: #{_head_forward.1} parent=66 // loop_header_branch
                %791 = sbr.rel (%p789) target = $region74
              $region71: #{_head_forward.1} parent=66 // loop_body
                %v795 = vld [vmem:[%s793] sm:$0xff]
                %796 = vst [vmem:[%s794] sm:$0xff] %v795
                %v797 = vld [vmem:[%s793 + $0x8] sm:$0xff]
                %798 = vst [vmem:[%s794 + $0x8] sm:$0xff] %v797
                %v799 = vld [vmem:[%s793 + $0x10] sm:$0xff]
                %800 = vst [vmem:[%s794 + $0x10] sm:$0xff] %v799
                %v801 = vld [vmem:[%s793 + $0x18] sm:$0xff]
                %802 = vst [vmem:[%s794 + $0x18] sm:$0xff] %v801
                %v803 = vld [vmem:[%s793 + $0x20] sm:$0xff]
                %804 = vst [vmem:[%s794 + $0x60] sm:$0xff] %v803
                %v805 = vld [vmem:[%s793 + $0x28] sm:$0xff]
                %806 = vst [vmem:[%s794 + $0x68] sm:$0xff] %v805
                %v807 = vld [vmem:[%s793 + $0x30] sm:$0xff]
                %808 = vst [vmem:[%s794 + $0x70] sm:$0xff] %v807
                %v809 = vld [vmem:[%s793 + $0x38] sm:$0xff]
                %810 = vst [vmem:[%s794 + $0x78] sm:$0xff] %v809
                %v811 = vld [vmem:[%s793 + $0x40] sm:$0xff]
                %812 = vst [vmem:[%s794 + $0xc0] sm:$0xff] %v811
                %v813 = vld [vmem:[%s793 + $0x48] sm:$0xff]
                %814 = vst [vmem:[%s794 + $0xc8] sm:$0xff] %v813
                %v815 = vld [vmem:[%s793 + $0x50] sm:$0xff]
                %816 = vst [vmem:[%s794 + $0xd0] sm:$0xff] %v815
                %v817 = vld [vmem:[%s793 + $0x58] sm:$0xff]
                %818 = vst [vmem:[%s794 + $0xd8] sm:$0xff] %v817
                %v819 = vld [vmem:[%s793 + $0x60] sm:$0xff]
                %820 = vst [vmem:[%s794 + $0x120] sm:$0xff] %v819
                %v821 = vld [vmem:[%s793 + $0x68] sm:$0xff]
                %822 = vst [vmem:[%s794 + $0x128] sm:$0xff] %v821
                %v823 = vld [vmem:[%s793 + $0x70] sm:$0xff]
                %824 = vst [vmem:[%s794 + $0x130] sm:$0xff] %v823
                %v825 = vld [vmem:[%s793 + $0x78] sm:$0xff]
                %826 = vst [vmem:[%s794 + $0x138] sm:$0xff] %v825
              $region72: #{_head_forward.1} parent=66 // loop_footer
                %s792 = sadd.s32 1, %s788
              $region73: #{_head_forward.1} parent=66 // loop_footer_branch
                %787 = sbr.rel target = $region69
              $region74: #{_head_forward.1} parent=66 // loop_exit
                _
            $region67: #{_head_forward.1} parent=62 // pred_fallthru
              _
            // Predicated region
            $region75: #{_head_forward.1} parent=62 // pred_check
              _
            $region76: #{_head_forward.1} parent=62 // pred_check_branch
              %828 = sbr.rel target = $region78
            $region77: #{_head_forward.1} parent=62 // pred_region
              _
            $region78: #{_head_forward.1} parent=62 // pred_fallthru
              _
          $region63: #{_head_forward.1} parent=58 // pred_fallthru
            _
          %829 = vnop
        $region59: #{_head_forward.1} parent=50 // pred_fallthru
          _
      $region51: #{_head_forward.1} parent=5 // pred_fallthru
        _
      %p830 = scmp.le.s32.totalorder 2, %s16
      // Predicated region
      $region79: #{_head_forward.1} parent=5 // pred_check
        %p831 = pneg %p830
      $region80: #{_head_forward.1} parent=5 // pred_check_branch
        %833 = sbr.rel (%p831) target = $region82
      $region81: #{_head_forward.1} parent=5 // pred_region
        %s834 = ssub.s32 %s16, 2
        // Predicated region
        $region83: #{_head_forward.1} parent=81 // pred_check
          %p835 = pneg %p127
        $region84: #{_head_forward.1} parent=81 // pred_check_branch
          %837 = sbr.rel (%p835) target = $region86
        $region85: #{_head_forward.1} parent=81 // pred_region
          %s838 = sand.u32 %s112, 1
          %s839 = sand.u32 %s112, 1
          %s840 = smul.addr %s839, 128
          %s841 = scalar_lea.vmem [#allocation5], %s840
        $region86: #{_head_forward.1} parent=81 // pred_fallthru
          _
      $region82: #{_head_forward.1} parent=5 // pred_fallthru
        _
    $region6: #{_head_forward.1} parent=1 // loop_footer
      %s20 = sadd.s32 1, %s16
    $region7: #{_head_forward.1} parent=1 // loop_footer_branch
      %15 = sbr.rel target = $region3
    $region8: #{_head_forward.1} parent=1 // loop_exit
      _

</llo_original>
